<compile_context>
chip_gen: v5e
topology: v5e:2x2
jax: 0.10.0
libtpu: 0.0.40
codegen_flags: <defaults>
</compile_context>

<pallas_src>
import jax
import jax.numpy as jnp
from jax.experimental import pallas as pl
from jax.experimental.pallas import tpu as pltpu


def _round_up(x, m):
    return (x + m - 1) // m * m


def _ffn_kernel(x_ref, w_ref, b_ref, o_ref):
    """One (i, j, k) grid step of y = x @ W + b.

    The output block is resident across the k axis (same (i, j) block index
    for every k), so we accumulate in f32 directly into o_ref — no scratch
    needed for an f32 output — and add the bias once in the k==last epilogue.
    """
    k = pl.program_id(2)

    # MXU push: bf16 (or f32) operands, f32 accumulation.
    part = jnp.dot(x_ref[...], w_ref[...], preferred_element_type=jnp.float32)

    @pl.when(k == 0)
    def _init():
        o_ref[...] = part

    @pl.when(k > 0)
    def _accumulate():
        o_ref[...] += part

    @pl.when(k == pl.num_programs(2) - 1)
    def _epilogue():
        # Bias added once per output tile; (1, tn) broadcasts over (tm, tn).
        o_ref[...] += b_ref[...]


def feed_forward_node(x, weights, bias, *, tm=1024, tn=1024, tk=512,
                      compute_dtype=jnp.bfloat16):
    """y = x @ weights + bias via a tiled Pallas TPU kernel.

    x:       (M, K) float32
    weights: (K, N) float32
    bias:    (N,)   float32
    returns: (M, N) float32

    compute_dtype: dtype the matmul operands are cast to (bf16 by default;
    pass jnp.float32 for exact-f32 operands). Accumulation is always f32.
    """
    M, K = x.shape
    K2, N = weights.shape
    assert K == K2, "input_size mismatch"
    assert bias.shape == (N,)

    in_bytes = jnp.dtype(compute_dtype).itemsize
    m_align = 16 if in_bytes == 2 else 8  # bf16 min tile is (16, 128)

    # ---- K handling: pad only to the 128-lane multiple (cheap, fused with
    # the dtype cast below) and pick a tk that divides the padded K exactly,
    # so zero-padding never exceeds 127 columns and the last k-block is full.
    Kp = _round_up(K, 128)
    tk = max(128, (min(tk, Kp) // 128) * 128)
    while Kp % tk:
        tk -= 128

    # ---- M/N tiles: clamp to the (aligned) problem, keep lane/sublane dense.
    tm = _round_up(min(tm, _round_up(M, m_align)), m_align)
    tn = _round_up(min(tn, _round_up(N, 128)), 128)

    # Keep >= 2 blocks on a parallel axis when possible so v7x's 2 TensorCores
    # both get work (dimension_semantics shards parallel grid axes).
    if pl.cdiv(M, tm) == 1 and pl.cdiv(N, tn) == 1:
        if N > 128:
            tn = _round_up(pl.cdiv(N, 2), 128)
        elif M > m_align:
            tm = _round_up(pl.cdiv(M, 2), m_align)

    grid_m = pl.cdiv(M, tm)
    grid_n = pl.cdiv(N, tn)
    grid_k = Kp // tk
    grid = (grid_m, grid_n, grid_k)

    # ---- Operand prep: cast to the compute dtype and zero-pad K only.
    # The cast is a full copy anyway, so XLA fuses the (small) K pad into it.
    # M/N tails are handled by Pallas partial blocks + masked edge stores.
    x_c = x.astype(compute_dtype)
    w_c = weights.astype(compute_dtype)
    if Kp != K:
        x_c = jnp.pad(x_c, ((0, 0), (0, Kp - K)))
        w_c = jnp.pad(w_c, ((0, Kp - K), (0, 0)))
    b_c = bias.astype(jnp.float32).reshape(1, N)

    # bytes_accessed including operand re-reads (x: N/tn times, W: M/tm times).
    bytes_accessed = (in_bytes * (M * Kp * grid_n + Kp * N * grid_m)
                      + 4 * M * N + 4 * N * grid_m * grid_n)

    out = pl.pallas_call(
        _ffn_kernel,
        out_shape=jax.ShapeDtypeStruct((M, N), jnp.float32),
        grid_spec=pltpu.PrefetchScalarGridSpec(
            num_scalar_prefetch=0,
            grid=grid,
            in_specs=[
                pl.BlockSpec((tm, tk), lambda i, j, k: (i, k)),   # x tile
                pl.BlockSpec((tk, tn), lambda i, j, k: (k, j)),   # W tile
                pl.BlockSpec((1, tn), lambda i, j, k: (0, j)),    # bias tile
            ],
            out_specs=pl.BlockSpec((tm, tn), lambda i, j, k: (i, j)),
        ),
        compiler_params=pltpu.CompilerParams(
            dimension_semantics=("parallel", "parallel", "arbitrary"),
            # Raise the scoped VMEM ceiling (16 MiB default on v5e, 32 MiB on
            # v6e/v7x). 64 MiB keeps the budget inside v7x's 64 MiB physical
            # VMEM per TC while unlocking the larger-tile configurations.
            vmem_limit_bytes=64 * 1024 * 1024,
        ),
        cost_estimate=pl.CostEstimate(
            flops=2 * M * N * K,
            transcendentals=0,
            bytes_accessed=bytes_accessed,
        ),
    )(x_c, w_c, b_c)
    # TODO(synk): if small tiles with exposed DMA are ever hit (tiny M with
    # huge K), add pipeline_mode=pl.Buffered(3) to the x/W BlockSpecs.
    return out


def _reference(x, weights, bias, compute_dtype):
    """Reference matching the kernel's numerics (operands quantized to
    compute_dtype, f32 accumulation)."""
    xc = x.astype(compute_dtype).astype(jnp.float32)
    wc = weights.astype(compute_dtype).astype(jnp.float32)
    return jnp.dot(xc, wc, precision=jax.lax.Precision.HIGHEST) + bias


if __name__ == "__main__":
    # Deterministic setup mirroring the PyTorch module's shapes (small).
    batch = 8
    input_size = 32
    output_size = 32

    key = jax.random.PRNGKey(0)
    kx, kw, kb = jax.random.split(key, 3)

    x = jax.random.normal(kx, (batch, input_size), dtype=jnp.float32)
    weights = jax.random.normal(kw, (input_size, output_size), dtype=jnp.float32)
    bias = jax.random.normal(kb, (output_size,), dtype=jnp.float32)

    y = jax.block_until_ready(feed_forward_node(x, weights, bias))
    assert y.shape == (batch, output_size)
    assert y.dtype == jnp.float32

    y_ref = _reference(x, weights, bias, jnp.bfloat16)
    err = jnp.max(jnp.abs(y - y_ref)) / (jnp.max(jnp.abs(y_ref)) + 1e-12)
    assert err < 1e-3, f"small-shape relative error too large: {err}"

    # Second check: exercise the multi-tile path (K accumulation across
    # several k steps, N split across parallel blocks, masked M/N edge
    # stores, epilogue bias) on deliberately non-aligned shapes.
    k2x, k2w, k2b = jax.random.split(jax.random.PRNGKey(1), 3)
    M2, K2, N2 = 272, 520, 300
    x2 = jax.random.normal(k2x, (M2, K2), dtype=jnp.float32)
    w2 = jax.random.normal(k2w, (K2, N2), dtype=jnp.float32)
    b2 = jax.random.normal(k2b, (N2,), dtype=jnp.float32)

    y2 = jax.block_until_ready(feed_forward_node(x2, w2, b2))
    assert y2.shape == (M2, N2)
    y2_ref = _reference(x2, w2, b2, jnp.bfloat16)
    err2 = jnp.max(jnp.abs(y2 - y2_ref)) / (jnp.max(jnp.abs(y2_ref)) + 1e-12)
    assert err2 < 1e-3, f"multi-tile relative error too large: {err2}"

    print("KERNEL_OK")
</pallas_src>

<mosaic_0001>
module attributes {stable_mosaic.version = 11 : i64} {
  func.func @_ffn_kernel(%arg0: i32, %arg1: i32, %arg2: i32, %arg3: memref<16x128xbf16, #tpu.memory_space<vmem>>, %arg4: memref<128x128xbf16, #tpu.memory_space<vmem>>, %arg5: memref<1x128xf32, #tpu.memory_space<vmem>>, %arg6: memref<16x128xf32, #tpu.memory_space<vmem>>) attributes {dimension_semantics = [#tpu.dimension_semantics<parallel>, #tpu.dimension_semantics<parallel>, #tpu.dimension_semantics<arbitrary>], iteration_bounds = array<i64: 1, 1, 1>, scalar_prefetch = 0 : i64, scratch_operands = 0 : i64, tpu.core_type = #tpu.core_type<tc>, window_params = [{transform_indices = @transform_0, window_bounds = array<i64: 16, 128>}, {transform_indices = @transform_1, window_bounds = array<i64: 128, 128>}, {transform_indices = @transform_2, window_bounds = array<i64: 1, 128>}, {transform_indices = @transform_3, window_bounds = array<i64: 16, 128>}]} {
    %c0 = arith.constant 0 : index
    %c0_0 = arith.constant 0 : index
    %0 = vector.load %arg3[%c0, %c0_0] : memref<16x128xbf16, #tpu.memory_space<vmem>>, vector<16x128xbf16>
    %c0_1 = arith.constant 0 : index
    %c0_2 = arith.constant 0 : index
    %1 = vector.load %arg4[%c0_1, %c0_2] : memref<128x128xbf16, #tpu.memory_space<vmem>>, vector<128x128xbf16>
    %cst = arith.constant dense<0.000000e+00> : vector<16x128xf32>
    %2 = tpu.matmul %0, %1, %cst {dimension_numbers = #tpu.dot_dimension_numbers<[1], [0], [0], [1], [0, 0, 1, 1], [], []>} : vector<16x128xbf16>, vector<128x128xbf16>, vector<16x128xf32> -> vector<16x128xf32>
    %c0_i32 = arith.constant 0 : i32
    %3 = arith.cmpi eq, %arg2, %c0_i32 : i32
    %4 = arith.extui %3 : i1 to i32
    %c0_i32_3 = arith.constant 0 : i32
    %5 = arith.cmpi ne, %4, %c0_i32_3 : i32
    scf.if %5 {
      %c0_8 = arith.constant 0 : index
      %c0_9 = arith.constant 0 : index
      %12 = vector.load %arg6[%c0_8, %c0_9] : memref<16x128xf32, #tpu.memory_space<vmem>>, vector<16x128xf32>
      tpu.vector_store %arg6[%c0_8, %c0_9], %2 {strides = array<i32>} : memref<16x128xf32, #tpu.memory_space<vmem>>, vector<16x128xf32>,
    } else {
    }
    %c0_i32_4 = arith.constant 0 : i32
    %6 = arith.cmpi sgt, %arg2, %c0_i32_4 : i32
    %7 = arith.extui %6 : i1 to i32
    %c0_i32_5 = arith.constant 0 : i32
    %8 = arith.cmpi ne, %7, %c0_i32_5 : i32
    scf.if %8 {
      %c0_8 = arith.constant 0 : index
      %c0_9 = arith.constant 0 : index
      %12 = vector.load %arg6[%c0_8, %c0_9] : memref<16x128xf32, #tpu.memory_space<vmem>>, vector<16x128xf32>
      %13 = arith.addf %12, %2 : vector<16x128xf32>
      %c0_10 = arith.constant 0 : index
      %c0_11 = arith.constant 0 : index
      %14 = vector.load %arg6[%c0_10, %c0_11] : memref<16x128xf32, #tpu.memory_space<vmem>>, vector<16x128xf32>
      tpu.vector_store %arg6[%c0_10, %c0_11], %13 {strides = array<i32>} : memref<16x128xf32, #tpu.memory_space<vmem>>, vector<16x128xf32>,
    } else {
    }
    %c0_i32_6 = arith.constant 0 : i32
    %9 = arith.cmpi eq, %arg2, %c0_i32_6 : i32
    %10 = arith.extui %9 : i1 to i32
    %c0_i32_7 = arith.constant 0 : i32
    %11 = arith.cmpi ne, %10, %c0_i32_7 : i32
    scf.if %11 {
      %c0_8 = arith.constant 0 : index
      %c0_9 = arith.constant 0 : index
      %12 = vector.load %arg6[%c0_8, %c0_9] : memref<16x128xf32, #tpu.memory_space<vmem>>, vector<16x128xf32>
      %c0_10 = arith.constant 0 : index
      %c0_11 = arith.constant 0 : index
      %13 = vector.load %arg5[%c0_10, %c0_11] : memref<1x128xf32, #tpu.memory_space<vmem>>, vector<1x128xf32>
      %14 = vector.broadcast %13 : vector<1x128xf32> to vector<16x128xf32>
      %15 = arith.addf %12, %14 : vector<16x128xf32>
      %c0_12 = arith.constant 0 : index
      %c0_13 = arith.constant 0 : index
      %16 = vector.load %arg6[%c0_12, %c0_13] : memref<16x128xf32, #tpu.memory_space<vmem>>, vector<16x128xf32>
      tpu.vector_store %arg6[%c0_12, %c0_13], %15 {strides = array<i32>} : memref<16x128xf32, #tpu.memory_space<vmem>>, vector<16x128xf32>,
    } else {
    }
    return
  }
  func.func @transform_0(%arg0: i32, %arg1: i32, %arg2: i32) -> (i32, i32) {
    %c0_i32 = arith.constant 0 : i32
    return %arg0, %arg2 : i32, i32
  }
  func.func @transform_1(%arg0: i32, %arg1: i32, %arg2: i32) -> (i32, i32) {
    %c0_i32 = arith.constant 0 : i32
    return %arg2, %arg1 : i32, i32
  }
  func.func @transform_2(%arg0: i32, %arg1: i32, %arg2: i32) -> (i32, i32) {
    %c0_i32 = arith.constant 0 : i32
    %c0_i32_0 = arith.constant 0 : i32
    return %c0_i32, %arg1 : i32, i32
  }
  func.func @transform_3(%arg0: i32, %arg1: i32, %arg2: i32) -> (i32, i32) {
    %c0_i32 = arith.constant 0 : i32
    return %arg0, %arg1 : i32, i32
  }
}

</mosaic_0001>

<llo_original>
// kernel: tpu_custom_call.1
$region0: #{tpu_custom_call.1}
  #allocation0 [shape = 'u32[]', space=smem, size = 0x4, offset = 0x4, fixed_abs, tag = 'smem constant byte address 0x4 - core index']
  #allocation1 [shape = 'u32[72,128]{1,0:T(1,128)}', space=vmem, size = 0x9000, scoped, tag = 'internal scratch']
  %s0 = inlined_call_operand.vmem [shape: bf16[8,128], index: 0, kind: input, shape index: {}]
  %s1 = inlined_call_operand.vmem [shape: bf16[128,32], index: 1, kind: input, shape index: {}]
  %s2 = inlined_call_operand.vmem [shape: f32[1,32], index: 2, kind: input, shape index: {}]
  %s3 = inlined_call_operand.hbm [shape: f32[8,32], index: 3, kind: output, shape index: {}]
  %s4 = sld [smem:[#allocation0]]
  $region34: #{tpu_custom_call.1} parent=0
    _
  %s6 = ssub.s32 1, %s4
  %s7 = scalar_select 0, %s6, %s4
  $region1: #{tpu_custom_call.1} parent=0
    #allocation2 [shape = 'u8[8192]{0}', space=vmem, size = 0x2000, scoped, tag = 'output window, operand 0, single buffered']
    #allocation3 [shape = 's32[1]{0}', space=sflag, size = 0x4, scoped, tag = 'scoped memory for tpu_custom_call.1']
    %8 = vsyncpa [#allocation3], 0
    // Predicated region
    $region2: #{tpu_custom_call.1} parent=1 // pred_check
      _
    $region3: #{tpu_custom_call.1} parent=1 // pred_check_branch
      %10 = sbr.rel (0) target = $region5
    $region4: #{tpu_custom_call.1} parent=1 // pred_region
      _
    $region5: #{tpu_custom_call.1} parent=1 // pred_fallthru
      _
    // Predicated region
    $region6: #{tpu_custom_call.1} parent=1 // pred_check
      _
    $region7: #{tpu_custom_call.1} parent=1 // pred_check_branch
      %12 = sbr.rel (0) target = $region9
    $region8: #{tpu_custom_call.1} parent=1 // pred_region
      _
    $region9: #{tpu_custom_call.1} parent=1 // pred_fallthru
      _
    // Predicated region
    $region10: #{tpu_custom_call.1} parent=1 // pred_check
      _
    $region11: #{tpu_custom_call.1} parent=1 // pred_check_branch
      %14 = sbr.rel (0) target = $region13
    $region12: #{tpu_custom_call.1} parent=1 // pred_region
      _
    $region13: #{tpu_custom_call.1} parent=1 // pred_fallthru
      _
    %v15 = vld [vmem:[%s0] sm:$0xf]
    %v16 = vld [vmem:[%s0 + $0x4] sm:$0xf]
    %v17 = vld [vmem:[%s1] sm:$0xf]
    %v18 = vld [vmem:[%s1 + $0x4] sm:$0xf]
    %v19 = vld [vmem:[%s1 + $0x8] sm:$0xf]
    %v20 = vld [vmem:[%s1 + $0xc] sm:$0xf]
    %v21 = vld [vmem:[%s1 + $0x10] sm:$0xf]
    %v22 = vld [vmem:[%s1 + $0x14] sm:$0xf]
    %v23 = vld [vmem:[%s1 + $0x18] sm:$0xf]
    %v24 = vld [vmem:[%s1 + $0x1c] sm:$0xf]
    %v25 = vld [vmem:[%s1 + $0x20] sm:$0xf]
    %v26 = vld [vmem:[%s1 + $0x24] sm:$0xf]
    %v27 = vld [vmem:[%s1 + $0x28] sm:$0xf]
    %v28 = vld [vmem:[%s1 + $0x2c] sm:$0xf]
    %v29 = vld [vmem:[%s1 + $0x30] sm:$0xf]
    %v30 = vld [vmem:[%s1 + $0x34] sm:$0xf]
    %v31 = vld [vmem:[%s1 + $0x38] sm:$0xf]
    %v32 = vld [vmem:[%s1 + $0x3c] sm:$0xf]
    %v35 = vunpack.c.l.b16 %v15
    %v36 = vunpack.c.l.b16 %v16
    %v37 = vpack.c.b16 %v36, %v35
    %v55 = vunpack.c.l.b16 %v17
    %v56 = vunpack.c.l.b16 %v18
    %v57 = vunpack.c.l.b16 %v19
    %v58 = vunpack.c.l.b16 %v20
    %v59 = vunpack.c.l.b16 %v21
    %v60 = vunpack.c.l.b16 %v22
    %v61 = vunpack.c.l.b16 %v23
    %v62 = vunpack.c.l.b16 %v24
    %v63 = vunpack.c.l.b16 %v25
    %v64 = vunpack.c.l.b16 %v26
    %v65 = vunpack.c.l.b16 %v27
    %v66 = vunpack.c.l.b16 %v28
    %v67 = vunpack.c.l.b16 %v29
    %v68 = vunpack.c.l.b16 %v30
    %v69 = vunpack.c.l.b16 %v31
    %v70 = vunpack.c.l.b16 %v32
    %v71 = vpack.c.b16 %v56, %v55
    %v72 = vpack.c.b16 %v58, %v57
    %v73 = vpack.c.b16 %v60, %v59
    %v74 = vpack.c.b16 %v62, %v61
    %v75 = vpack.c.b16 %v64, %v63
    %v76 = vpack.c.b16 %v66, %v65
    %v77 = vpack.c.b16 %v68, %v67
    %v78 = vpack.c.b16 %v70, %v69
    %87 = vmatpush.bf16.msra.mxu0 %v78
    %88 = vmatpush.bf16.msra.mxu0 %v77
    %89 = vmatpush.bf16.msra.mxu0 %v76
    %90 = vmatpush.bf16.msra.mxu0 %v75
    %91 = vmatpush.bf16.msra.mxu0 %v74
    %92 = vmatpush.bf16.msra.mxu0 %v73
    %93 = vmatpush.bf16.msra.mxu0 %v72
    %94 = vmatpush.bf16.msra.mxu0 %v71
    %95 = vmatmul.bf16.gmra.mxu0 %v37
    %v96 = vpop.f32.mrf.mxu0
    %v97 = vadd.f32 0.0, %v96
    %v98 = vpop.f32.mrf.mxu0
    %v99 = vadd.f32 0.0, %v98
    %100 = vdwg.mxu0
    %p101 = scmp.eq.s32.totalorder 0, 0
    // Predicated region
    $region14: #{tpu_custom_call.1} parent=1 // pred_check
      %p102 = pneg %p101
    $region15: #{tpu_custom_call.1} parent=1 // pred_check_branch
      %104 = sbr.rel (%p102) target = $region17
    $region16: #{tpu_custom_call.1} parent=1 // pred_region
      %105 = vst [vmem:[#allocation2] sm:$0xff] %v97
      %106 = vst [vmem:[#allocation2 + $0x8] sm:$0xff] %v99
    $region17: #{tpu_custom_call.1} parent=1 // pred_fallthru
      _
    %p107 = scmp.gt.s32.totalorder 0, 0
    // Predicated region
    $region18: #{tpu_custom_call.1} parent=1 // pred_check
      %p108 = pneg %p107
    $region19: #{tpu_custom_call.1} parent=1 // pred_check_branch
      %110 = sbr.rel (%p108) target = $region21
    $region20: #{tpu_custom_call.1} parent=1 // pred_region
      %v111 = vld [vmem:[#allocation2] sm:$0xff]
      %v112 = vld [vmem:[#allocation2 + $0x8] sm:$0xff]
      %v113 = vadd.f32 %v111, %v97
      %v114 = vadd.f32 %v112, %v99
      %115 = vst [vmem:[#allocation2] sm:$0xff] %v113
      %116 = vst [vmem:[#allocation2 + $0x8] sm:$0xff] %v114
    $region21: #{tpu_custom_call.1} parent=1 // pred_fallthru
      _
    // Predicated region
    $region22: #{tpu_custom_call.1} parent=1 // pred_check
      %p117 = pneg %p101
    $region23: #{tpu_custom_call.1} parent=1 // pred_check_branch
      %119 = sbr.rel (%p117) target = $region25
    $region24: #{tpu_custom_call.1} parent=1 // pred_region
      %v120 = vld [vmem:[#allocation2] sm:$0xff]
      %v121 = vld [vmem:[#allocation2 + $0x8] sm:$0xff]
      %v122 = vld [vmem:[%s2] sm:$0x1]
      %v124 = vperm.slane %v122, 0
      %v126 = vadd.f32 %v120, %v124
      %v127 = vadd.f32 %v121, %v124
      %128 = vst [vmem:[#allocation2] sm:$0xff] %v126
      %129 = vst [vmem:[#allocation2 + $0x8] sm:$0xff] %v127
    $region25: #{tpu_custom_call.1} parent=1 // pred_fallthru
      _
    // Predicated region
    $region26: #{tpu_custom_call.1} parent=1 // pred_check
      _
    $region27: #{tpu_custom_call.1} parent=1 // pred_check_branch
      %131 = sbr.rel (0) target = $region29
    $region28: #{tpu_custom_call.1} parent=1 // pred_region
      %133 = vsyncadd [#allocation3], 128
      %s134 = sshll.u32 [#allocation2], 4
      %s135 = int_to_ptr.vmem [resolvable:$true] %s134
      %s136 = sshll.u32 %s3, 4
      %s137 = int_to_ptr.hbm [resolvable:$true] %s136
      %142 = dma.vmem_to_hbm [thread:$0]  %s135, 128, %s137, [#allocation3], 128, 128, 8
    $region29: #{tpu_custom_call.1} parent=1 // pred_fallthru
      _
    // Predicated region
    $region30: #{tpu_custom_call.1} parent=1 // pred_check
      _
    $region31: #{tpu_custom_call.1} parent=1 // pred_check_branch
      %144 = sbr.rel (0) target = $region33
    $region32: #{tpu_custom_call.1} parent=1 // pred_region
      %146 = dma.done [#allocation3], 256
    $region33: #{tpu_custom_call.1} parent=1 // pred_fallthru
      _
    %147 = vsyncpa [#allocation3], 1

</llo_original>
